<compile_context>
chip_gen: v7x
topology: tpu7x:2x2x1
jax: 0.10.0
libtpu: 0.0.40
codegen_flags: <defaults>
</compile_context>

<pallas_src>
import functools

import jax
import jax.numpy as jnp
from jax.experimental import pallas as pl
from jax.experimental.pallas import tpu as pltpu


# ----------------------------------------------------------------------------
# Fused kernel: conv (one matmul on im2col input) + BN (batch stats) + ReLU
# ----------------------------------------------------------------------------
def _fused_conv_bn_relu_kernel(xcol_ref, w_ref, gb_ref, out_ref,
                               *, N, HW, eps, apply_bn):
    # xcol_ref : (K, N*HW)      im2col'd input, lane dim = N*H*W (512 lanes)
    # w_ref    : (Cout, K)      transposed conv weight
    # gb_ref   : (Cout, 2)      column 0 = gamma, column 1 = beta
    # out_ref  : (N, Cout, HW)  NCHW-compatible (reshape only in wrapper)
    y = jnp.dot(w_ref[...], xcol_ref[...],
                preferred_element_type=jnp.float32)          # (Cout, N*HW) f32

    if apply_bn:
        count = jnp.float32(N * HW)
        # per-channel mean over (N, H, W)
        mean = y.sum(axis=1, keepdims=True) / count          # (Cout, 1)
        # two-pass (centered) biased variance, matching BN training normalization
        c = y - mean
        var = (c * c).sum(axis=1, keepdims=True) / count     # (Cout, 1)
        scale = gb_ref[:, 0:1] * jax.lax.rsqrt(var + eps)    # (Cout, 1)
        shift = gb_ref[:, 1:2] - mean * scale
        y = y * scale + shift

    y = jnp.maximum(y, 0.0)

    # Static 256-lane slices -> unmasked full-width stores, one per image.
    for n in range(N):
        out_ref[n] = y[:, n * HW:(n + 1) * HW].astype(out_ref.dtype)


# ----------------------------------------------------------------------------
# Wrapper: ConvBNRelu forward
# ----------------------------------------------------------------------------
@functools.partial(jax.jit, static_argnames=("eps",))
def conv_bn_relu(x_nchw, weight_hwio, gamma, beta, *, eps=1e-5):
    """x_nchw: (N, Cin, H, W) f32; weight_hwio: (KH, KW, Cin, Cout).
    Returns (N, Cout, H, W) f32 (stride 1, padding = kernel_size // 2)."""
    N, Cin, H, W = x_nchw.shape
    KH, KW, _, Cout = weight_hwio.shape
    ph, pw = KH // 2, KW // 2
    HW = H * W
    K = KH * KW * Cin

    # Static guard matching PyTorch forward: BN applied only if N*H*W != 1.
    apply_bn = (N * H * W) != 1

    # im2col directly in NCHW (tiny data; fused by XLA under jit).
    # Row ordering (kh, kw, cin) matches weight_hwio transposed/reshaped below;
    # column ordering is (n, hw) so the matmul output is (Cout, N*HW).
    # TODO(synk): for large Cin*H*W move the 9-tap accumulation in-kernel (or use
    # lax.conv_general_dilated_patches) to avoid the ~9x im2col HBM amplification.
    x_pad = jnp.pad(x_nchw, ((0, 0), (0, 0), (ph, ph), (pw, pw)))
    cols = []
    for kh in range(KH):
        for kw in range(KW):
            cols.append(x_pad[:, :, kh:kh + H, kw:kw + W].reshape(N, Cin, HW))
    # (KH*KW, N, Cin, HW) -> (KH*KW, Cin, N, HW) -> (K, N*HW)
    x_col = jnp.stack(cols, axis=0).transpose(0, 2, 1, 3).reshape(K, N * HW)
    x_col = x_col.astype(jnp.float32)

    # (Cout, K) weight so the matmul result is lane-dense along N*H*W.
    w_t = jnp.transpose(weight_hwio, (3, 0, 1, 2)).reshape(Cout, K).astype(jnp.float32)

    # gamma/beta merged into a single (Cout, 2) input.
    gb = jnp.stack([gamma.astype(jnp.float32), beta.astype(jnp.float32)],
                   axis=1)                                            # (Cout, 2)

    kern = functools.partial(_fused_conv_bn_relu_kernel,
                             N=N, HW=HW, eps=eps, apply_bn=apply_bn)

    out = pl.pallas_call(
        kern,
        out_shape=jax.ShapeDtypeStruct((N, Cout, HW), jnp.float32),
        grid=(1,),
        in_specs=[
            pl.BlockSpec((K, N * HW), lambda i: (0, 0)),
            pl.BlockSpec((Cout, K), lambda i: (0, 0)),
            pl.BlockSpec((Cout, 2), lambda i: (0, 0)),
        ],
        out_specs=pl.BlockSpec((N, Cout, HW), lambda i: (0, 0, 0)),
        compiler_params=pltpu.CompilerParams(dimension_semantics=("arbitrary",)),
    )(x_col, w_t, gb)

    # (N, Cout, H*W) -> (N, Cout, H, W): metadata-only reshape, already NCHW.
    # TODO(synk): BatchNorm running_mean/running_var (momentum=0.9) buffer updates are
    # training-side state, not part of the forward output, and are not emitted here.
    return out.reshape(N, Cout, H, W)


# ----------------------------------------------------------------------------
# Pure-JAX reference for a correctness sanity check.
# ----------------------------------------------------------------------------
def _reference(x_nchw, weight_hwio, gamma, beta, eps=1e-5):
    x_nhwc = jnp.transpose(x_nchw, (0, 2, 3, 1))
    conv = jax.lax.conv_general_dilated(
        x_nhwc, weight_hwio, window_strides=(1, 1), padding="SAME",
        dimension_numbers=("NHWC", "HWIO", "NHWC"))
    mean = jnp.mean(conv, axis=(0, 1, 2))
    var = jnp.mean((conv - mean) ** 2, axis=(0, 1, 2))
    y = (conv - mean) / jnp.sqrt(var + eps) * gamma + beta
    y = jnp.maximum(y, 0.0)
    return jnp.transpose(y, (0, 3, 1, 2))


if __name__ == "__main__":
    # Module config: ConvBNRelu(in_channels=4, out_channels=8, kernel_size=3, stride=1)
    N, Cin, H, W = 2, 4, 16, 16
    Cout, KH, KW = 8, 3, 3

    key = jax.random.PRNGKey(0)
    kx, kw, kg, kb = jax.random.split(key, 4)
    x = jax.random.normal(kx, (N, Cin, H, W), dtype=jnp.float32)
    weight = jax.random.normal(kw, (KH, KW, Cin, Cout), dtype=jnp.float32) * 0.1
    # non-trivial affine params to exercise the BN scale/shift path
    gamma = 1.0 + 0.1 * jax.random.normal(kg, (Cout,), dtype=jnp.float32)
    beta = 0.1 * jax.random.normal(kb, (Cout,), dtype=jnp.float32)

    out = conv_bn_relu(x, weight, gamma, beta)
    out = jax.block_until_ready(out)

    ref = _reference(x, weight, gamma, beta)
    assert out.shape == (N, Cout, H, W)
    assert jnp.allclose(out, ref, atol=1e-4, rtol=1e-4), "mismatch vs reference"

    print("KERNEL_OK")
</pallas_src>

<mosaic_0001>
module attributes {stable_mosaic.version = 11 : i64} {
  func.func @_fused_conv_bn_relu_kernel(%arg0: i32, %arg1: memref<36x512xf32, #tpu.memory_space<vmem>>, %arg2: memref<8x36xf32, #tpu.memory_space<vmem>>, %arg3: memref<8x2xf32, #tpu.memory_space<vmem>>, %arg4: memref<2x8x256xf32, #tpu.memory_space<vmem>>) attributes {dimension_semantics = [#tpu.dimension_semantics<arbitrary>], iteration_bounds = array<i64: 1>, scalar_prefetch = 0 : i64, scratch_operands = 0 : i64, tpu.core_type = #tpu.core_type<tc>, window_params = [{pipeline_mode = #tpu.pipeline_mode<synchronous>, transform_indices = @transform_0, window_bounds = array<i64: 36, 512>}, {pipeline_mode = #tpu.pipeline_mode<synchronous>, transform_indices = @transform_1, window_bounds = array<i64: 8, 36>}, {pipeline_mode = #tpu.pipeline_mode<synchronous>, transform_indices = @transform_2, window_bounds = array<i64: 8, 2>}, {pipeline_mode = #tpu.pipeline_mode<synchronous>, transform_indices = @transform_3, window_bounds = array<i64: 2, 8, 256>}]} {
    %c0 = arith.constant 0 : index
    %c0_0 = arith.constant 0 : index
    %0 = vector.load %arg2[%c0, %c0_0] : memref<8x36xf32, #tpu.memory_space<vmem>>, vector<8x36xf32>
    %c0_1 = arith.constant 0 : index
    %c0_2 = arith.constant 0 : index
    %1 = vector.load %arg1[%c0_1, %c0_2] : memref<36x512xf32, #tpu.memory_space<vmem>>, vector<36x512xf32>
    %cst = arith.constant dense<0.000000e+00> : vector<8x512xf32>
    %2 = tpu.matmul %0, %1, %cst {dimension_numbers = #tpu.dot_dimension_numbers<[1], [0], [0], [1], [0, 0, 1, 1], [], []>} : vector<8x36xf32>, vector<36x512xf32>, vector<8x512xf32> -> vector<8x512xf32>
    %cst_3 = arith.constant dense<0.000000e+00> : vector<8xf32>
    %3 = vector.multi_reduction <add>, %2, %cst_3 [1] : vector<8x512xf32> to vector<8xf32>
    %4 = vector.shape_cast %3 : vector<8xf32> to vector<8x1xf32>
    %cst_4 = arith.constant 5.120000e+02 : f32
    %5 = vector.broadcast %cst_4 : f32 to vector<8x1xf32>
    %6 = arith.divf %4, %5 : vector<8x1xf32>
    %7 = vector.broadcast %6 : vector<8x1xf32> to vector<8x512xf32>
    %8 = arith.subf %2, %7 : vector<8x512xf32>
    %9 = arith.mulf %8, %8 : vector<8x512xf32>
    %cst_5 = arith.constant dense<0.000000e+00> : vector<8xf32>
    %10 = vector.multi_reduction <add>, %9, %cst_5 [1] : vector<8x512xf32> to vector<8xf32>
    %11 = vector.shape_cast %10 : vector<8xf32> to vector<8x1xf32>
    %cst_6 = arith.constant 5.120000e+02 : f32
    %12 = vector.broadcast %cst_6 : f32 to vector<8x1xf32>
    %13 = arith.divf %11, %12 : vector<8x1xf32>
    %c0_7 = arith.constant 0 : index
    %c0_8 = arith.constant 0 : index
    %14 = vector.load %arg3[%c0_7, %c0_8] : memref<8x2xf32, #tpu.memory_space<vmem>>, vector<8x1xf32>
    %cst_9 = arith.constant 9.99999974E-6 : f32
    %15 = vector.broadcast %cst_9 : f32 to vector<8x1xf32>
    %16 = arith.addf %13, %15 : vector<8x1xf32>
    %17 = math.rsqrt %16 : vector<8x1xf32>
    %18 = arith.mulf %14, %17 : vector<8x1xf32>
    %c0_10 = arith.constant 0 : index
    %c1 = arith.constant 1 : index
    %19 = vector.load %arg3[%c0_10, %c1] : memref<8x2xf32, #tpu.memory_space<vmem>>, vector<8x1xf32>
    %20 = arith.mulf %6, %18 : vector<8x1xf32>
    %21 = arith.subf %19, %20 : vector<8x1xf32>
    %22 = vector.broadcast %18 : vector<8x1xf32> to vector<8x512xf32>
    %23 = arith.mulf %2, %22 : vector<8x512xf32>
    %24 = vector.broadcast %21 : vector<8x1xf32> to vector<8x512xf32>
    %25 = arith.addf %23, %24 : vector<8x512xf32>
    %cst_11 = arith.constant 0.000000e+00 : f32
    %26 = vector.broadcast %cst_11 : f32 to vector<8x512xf32>
    %27 = arith.maximumf %25, %26 : vector<8x512xf32>
    %28 = vector.extract_strided_slice %27 {offsets = [0, 0], sizes = [8, 256], strides = [1, 1]} : vector<8x512xf32> to vector<8x256xf32>
    %c0_12 = arith.constant 0 : index
    %c0_13 = arith.constant 0 : index
    %c0_14 = arith.constant 0 : index
    %29 = vector.load %arg4[%c0_12, %c0_13, %c0_14] : memref<2x8x256xf32, #tpu.memory_space<vmem>>, vector<1x8x256xf32>
    %30 = vector.shape_cast %29 : vector<1x8x256xf32> to vector<8x256xf32>
    %31 = vector.shape_cast %28 : vector<8x256xf32> to vector<1x8x256xf32>
    tpu.vector_store %arg4[%c0_12, %c0_13, %c0_14], %31 {strides = array<i32>} : memref<2x8x256xf32, #tpu.memory_space<vmem>>, vector<1x8x256xf32>,
    %32 = vector.extract_strided_slice %27 {offsets = [0, 256], sizes = [8, 256], strides = [1, 1]} : vector<8x512xf32> to vector<8x256xf32>
    %c1_15 = arith.constant 1 : index
    %c0_16 = arith.constant 0 : index
    %c0_17 = arith.constant 0 : index
    %33 = vector.load %arg4[%c1_15, %c0_16, %c0_17] : memref<2x8x256xf32, #tpu.memory_space<vmem>>, vector<1x8x256xf32>
    %34 = vector.shape_cast %33 : vector<1x8x256xf32> to vector<8x256xf32>
    %35 = vector.shape_cast %32 : vector<8x256xf32> to vector<1x8x256xf32>
    tpu.vector_store %arg4[%c1_15, %c0_16, %c0_17], %35 {strides = array<i32>} : memref<2x8x256xf32, #tpu.memory_space<vmem>>, vector<1x8x256xf32>,
    return
  }
  func.func @transform_0(%arg0: i32) -> (i32, i32) {
    %c0_i32 = arith.constant 0 : i32
    %c0_i32_0 = arith.constant 0 : i32
    %c0_i32_1 = arith.constant 0 : i32
    return %c0_i32, %c0_i32_0 : i32, i32
  }
  func.func @transform_1(%arg0: i32) -> (i32, i32) {
    %c0_i32 = arith.constant 0 : i32
    %c0_i32_0 = arith.constant 0 : i32
    %c0_i32_1 = arith.constant 0 : i32
    return %c0_i32, %c0_i32_0 : i32, i32
  }
  func.func @transform_2(%arg0: i32) -> (i32, i32) {
    %c0_i32 = arith.constant 0 : i32
    %c0_i32_0 = arith.constant 0 : i32
    %c0_i32_1 = arith.constant 0 : i32
    return %c0_i32, %c0_i32_0 : i32, i32
  }
  func.func @transform_3(%arg0: i32) -> (i32, i32, i32) {
    %c0_i32 = arith.constant 0 : i32
    %c0_i32_0 = arith.constant 0 : i32
    %c0_i32_1 = arith.constant 0 : i32
    %c0_i32_2 = arith.constant 0 : i32
    return %c0_i32, %c0_i32_0, %c0_i32_1 : i32, i32, i32
  }
}

</mosaic_0001>

<llo_original>
// kernel: conv_bn_relu.1
$region0: #{conv_bn_relu.1}
  #allocation0 [shape = 'u32[]', space=smem, size = 0x4, offset = 0x4, fixed_abs, tag = 'smem constant byte address 0x4 - core index']
  #allocation1 [shape = 'u32[144,128]{1,0:T(1,128)}', space=vmem, size = 0x12000, scoped, tag = 'internal scratch']
  %s0 = inlined_call_operand.vmem [shape: f32[36,512], index: 0, kind: input, shape index: {}]
  %s1 = inlined_call_operand.vmem [shape: f32[8,36], index: 1, kind: input, shape index: {}]
  %s2 = inlined_call_operand.vmem [shape: f32[8,2], index: 2, kind: input, shape index: {}]
  %s3 = inlined_call_operand.vmem [shape: f32[2,8,256], index: 3, kind: output, shape index: {}]
  %s4 = sld [smem:[#allocation0]]
  $region22: #{conv_bn_relu.1} parent=0
    _
  %s6 = ssub.s32 1, %s4
  %s7 = scalar_select 0, %s6, %s4
  // Predicated region
  $region2: #{conv_bn_relu.1} parent=0 // pred_check
    _
  $region3: #{conv_bn_relu.1} parent=0 // pred_check_branch
    %9 = sbr.rel (0) target = $region5
  $region4: #{conv_bn_relu.1} parent=0 // pred_region
    _
  $region5: #{conv_bn_relu.1} parent=0 // pred_fallthru
    _
  // Predicated region
  $region6: #{conv_bn_relu.1} parent=0 // pred_check
    _
  $region7: #{conv_bn_relu.1} parent=0 // pred_check_branch
    %11 = sbr.rel (0) target = $region9
  $region8: #{conv_bn_relu.1} parent=0 // pred_region
    _
  $region9: #{conv_bn_relu.1} parent=0 // pred_fallthru
    _
  // Predicated region
  $region10: #{conv_bn_relu.1} parent=0 // pred_check
    _
  $region11: #{conv_bn_relu.1} parent=0 // pred_check_branch
    %13 = sbr.rel (0) target = $region13
  $region12: #{conv_bn_relu.1} parent=0 // pred_region
    _
  $region13: #{conv_bn_relu.1} parent=0 // pred_fallthru
    _
  %v14 = vld [vmem:[%s1] sm:$0xff]
  %v15 = vld [vmem:[%s0] sm:$0xff]
  %v16 = vld [vmem:[%s0 + $0x8] sm:$0xff]
  %v17 = vld [vmem:[%s0 + $0x10] sm:$0xff]
  %v18 = vld [vmem:[%s0 + $0x18] sm:$0xff]
  %v19 = vld [vmem:[%s0 + $0x20] sm:$0xff]
  %v20 = vld [vmem:[%s0 + $0x28] sm:$0xff]
  %v21 = vld [vmem:[%s0 + $0x30] sm:$0xff]
  %v22 = vld [vmem:[%s0 + $0x38] sm:$0xff]
  %v23 = vld [vmem:[%s0 + $0x40] sm:$0xff]
  %v24 = vld [vmem:[%s0 + $0x48] sm:$0xff]
  %v25 = vld [vmem:[%s0 + $0x50] sm:$0xff]
  %v26 = vld [vmem:[%s0 + $0x58] sm:$0xff]
  %v27 = vld [vmem:[%s0 + $0x60] sm:$0xff]
  %v28 = vld [vmem:[%s0 + $0x68] sm:$0xff]
  %v29 = vld [vmem:[%s0 + $0x70] sm:$0xff]
  %v30 = vld [vmem:[%s0 + $0x78] sm:$0xff]
  %v31 = vld [vmem:[%s0 + $0x80] sm:$0xf]
  %v32 = vld [vmem:[%s0 + $0x88] sm:$0xf]
  %v33 = vld [vmem:[%s0 + $0x90] sm:$0xf]
  %v34 = vld [vmem:[%s0 + $0x98] sm:$0xf]
  %vm35 = vcmask 293888
  %v37 = vsel %vm35, %v14, 0
  %vm39 = vcmask 1043456
  %v41 = vsel %vm39, %v31, 0
  %v44 = vsel %vm39, %v32, 0
  %v47 = vsel %vm39, %v33, 0
  %v50 = vsel %vm39, %v34, 0
  %52 = vmatprep.subr.mxu0 %v16
  %53 = vmatpush1.msra.mxu0 %v15
  %54 = vmatprep.subr.mxu0 %v20
  %55 = vmatpush1.msra.mxu0 %v19
  %56 = vmatprep.subr.mxu0 %v24
  %57 = vmatpush1.msra.mxu0 %v23
  %58 = vmatprep.subr.mxu0 %v28
  %59 = vmatpush1.msra.mxu0 %v27
  %60 = vmatprep.subr.mxu0 %v44
  %61 = vmatpush1.msra.mxu0 %v41
  %62 = vmatprep.subr.mxu0 0.0
  %63 = vmatpush1.msra.mxu0 0.0
  %64 = vmatprep.subr.mxu0 0.0
  %65 = vmatpush1.msra.mxu0 0.0
  %66 = vmatprep.subr.mxu0 0.0
  %67 = vmatpush1.msra.mxu0 0.0
  %68 = vmatprep.subr.mxu0 0.0
  %69 = vmatpush1.msra.mxu0 0.0
  %70 = vmatprep.subr.mxu0 0.0
  %71 = vmatpush1.msra.mxu0 0.0
  %72 = vmatprep.subr.mxu0 0.0
  %73 = vmatpush1.msra.mxu0 0.0
  %74 = vmatprep.subr.mxu0 0.0
  %75 = vmatpush1.msra.mxu0 0.0
  %76 = vmatprep.subr.mxu0 0.0
  %77 = vmatpush1.msra.mxu0 0.0
  %78 = vmatprep.subr.mxu0 0.0
  %79 = vmatpush1.msra.mxu0 0.0
  %80 = vmatprep.subr.mxu0 0.0
  %81 = vmatpush1.msra.mxu0 0.0
  %82 = vmatprep.subr.mxu0 0.0
  %83 = vmatpush1.msra.mxu0 0.0
  %84 = vmatprep.subr.mxu0 0.0
  %85 = vmatpush1.msra.mxu0 0.0
  %86 = vmatprep.subr.mxu0 0.0
  %87 = vmatpush1.msra.mxu0 0.0
  %88 = vmatprep.subr.mxu0 0.0
  %89 = vmatpush1.msra.mxu0 0.0
  %90 = vmatprep.subr.mxu0 0.0
  %91 = vmatpush1.msra.mxu0 0.0
  %92 = vmatprep.subr.mxu0 0.0
  %93 = vmatpush1.msra.mxu0 0.0
  %94 = vmatprep.subr.mxu0 0.0
  %95 = vmatpush1.msra.mxu0 0.0
  %96 = vmatprep.subr.mxu0 0.0
  %97 = vmatpush1.msra.mxu0 0.0
  %98 = vmatprep.subr.mxu0 0.0
  %99 = vmatpush1.msra.mxu0 0.0
  %100 = vmatprep.subr.mxu0 0.0
  %101 = vmatpush1.msra.mxu0 0.0
  %102 = vmatprep.subr.mxu0 0.0
  %103 = vmatpush1.msra.mxu0 0.0
  %104 = vmatprep.subr.mxu0 0.0
  %105 = vmatpush1.msra.mxu0 0.0
  %106 = vmatprep.subr.mxu0 0.0
  %107 = vmatpush1.msra.mxu0 0.0
  %108 = vmatprep.subr.mxu0 0.0
  %109 = vmatpush1.msra.mxu0 0.0
  %110 = vmatprep.subr.mxu0 0.0
  %111 = vmatpush1.msra.mxu0 0.0
  %112 = vmatprep.subr.mxu0 0.0
  %113 = vmatpush1.msra.mxu0 0.0
  %114 = vmatprep.subr.mxu0 0.0
  %115 = vmatpush1.msra.mxu0 0.0
  %116 = vmatprep.mubr.f32.mxu0 0.0
  %117 = vmatmul.mubr.f32.gmra.mrb[0].mxu0 %v37
  %v118 = vpop.f32.mrb[0].mxu0
  %v119 = vadd.f32 0.0, %v118
  %v120 = vpop.f32.mrb[0].mxu0
  %v121 = vadd.f32 0.0, %v120
  %122 = vdwg.mxu0
  %123 = vmatprep.subr.mxu0 %v18
  %124 = vmatpush1.msra.mxu0 %v17
  %125 = vmatprep.subr.mxu0 %v22
  %126 = vmatpush1.msra.mxu0 %v21
  %127 = vmatprep.subr.mxu0 %v26
  %128 = vmatpush1.msra.mxu0 %v25
  %129 = vmatprep.subr.mxu0 %v30
  %130 = vmatpush1.msra.mxu0 %v29
  %131 = vmatprep.subr.mxu0 %v50
  %132 = vmatpush1.msra.mxu0 %v47
  %133 = vmatprep.subr.mxu0 0.0
  %134 = vmatpush1.msra.mxu0 0.0
  %135 = vmatprep.subr.mxu0 0.0
  %136 = vmatpush1.msra.mxu0 0.0
  %137 = vmatprep.subr.mxu0 0.0
  %138 = vmatpush1.msra.mxu0 0.0
  %139 = vmatprep.subr.mxu0 0.0
  %140 = vmatpush1.msra.mxu0 0.0
  %141 = vmatprep.subr.mxu0 0.0
  %142 = vmatpush1.msra.mxu0 0.0
  %143 = vmatprep.subr.mxu0 0.0
  %144 = vmatpush1.msra.mxu0 0.0
  %145 = vmatprep.subr.mxu0 0.0
  %146 = vmatpush1.msra.mxu0 0.0
  %147 = vmatprep.subr.mxu0 0.0
  %148 = vmatpush1.msra.mxu0 0.0
  %149 = vmatprep.subr.mxu0 0.0
  %150 = vmatpush1.msra.mxu0 0.0
  %151 = vmatprep.subr.mxu0 0.0
  %152 = vmatpush1.msra.mxu0 0.0
  %153 = vmatprep.subr.mxu0 0.0
  %154 = vmatpush1.msra.mxu0 0.0
  %155 = vmatprep.subr.mxu0 0.0
  %156 = vmatpush1.msra.mxu0 0.0
  %157 = vmatprep.subr.mxu0 0.0
  %158 = vmatpush1.msra.mxu0 0.0
  %159 = vmatprep.subr.mxu0 0.0
  %160 = vmatpush1.msra.mxu0 0.0
  %161 = vmatprep.subr.mxu0 0.0
  %162 = vmatpush1.msra.mxu0 0.0
  %163 = vmatprep.subr.mxu0 0.0
  %164 = vmatpush1.msra.mxu0 0.0
  %165 = vmatprep.subr.mxu0 0.0
  %166 = vmatpush1.msra.mxu0 0.0
  %167 = vmatprep.subr.mxu0 0.0
  %168 = vmatpush1.msra.mxu0 0.0
  %169 = vmatprep.subr.mxu0 0.0
  %170 = vmatpush1.msra.mxu0 0.0
  %171 = vmatprep.subr.mxu0 0.0
  %172 = vmatpush1.msra.mxu0 0.0
  %173 = vmatprep.subr.mxu0 0.0
  %174 = vmatpush1.msra.mxu0 0.0
  %175 = vmatprep.subr.mxu0 0.0
  %176 = vmatpush1.msra.mxu0 0.0
  %177 = vmatprep.subr.mxu0 0.0
  %178 = vmatpush1.msra.mxu0 0.0
  %179 = vmatprep.subr.mxu0 0.0
  %180 = vmatpush1.msra.mxu0 0.0
  %181 = vmatprep.subr.mxu0 0.0
  %182 = vmatpush1.msra.mxu0 0.0
  %183 = vmatprep.subr.mxu0 0.0
  %184 = vmatpush1.msra.mxu0 0.0
  %185 = vmatprep.subr.mxu0 0.0
  %186 = vmatpush1.msra.mxu0 0.0
  %187 = vmatprep.mubr.f32.mxu0 0.0
  %188 = vmatmul.mubr.f32.gmra.mrb[0].mxu0 %v37
  %v189 = vpop.f32.mrb[0].mxu0
  %v190 = vadd.f32 0.0, %v189
  %v191 = vpop.f32.mrb[0].mxu0
  %v192 = vadd.f32 0.0, %v191
  %193 = vdwg.mxu0
  %v194 = vadd.f32 %v119, %v121
  %v195 = vadd.f32 %v194, %v190
  %v196 = vadd.f32 %v195, %v192
  %197 = vadd.xlane.f32.xlu0 %v196
  %v198 = vpop.xlane.xlu0 %197
  %v199 = vrcp.pop 512.0
  %v200 = vmul.f32 %v198, %v199
  %v201 = vsub.f32 %v119, %v200
  %v202 = vsub.f32 %v121, %v200
  %v203 = vsub.f32 %v190, %v200
  %v204 = vsub.f32 %v192, %v200
  %v205 = vmul.f32 %v201, %v201
  %v206 = vmul.f32 %v202, %v202
  %v207 = vmul.f32 %v203, %v203
  %v208 = vmul.f32 %v204, %v204
  %v209 = vadd.f32 %v205, %v206
  %v210 = vadd.f32 %v209, %v207
  %v211 = vadd.f32 %v210, %v208
  %212 = vadd.xlane.f32.xlu0 %v211
  %v213 = vpop.xlane.xlu0 %212
  %v214 = vmul.f32 %v213, %v199
  %v215 = vld [vmem:[%s2] sm:$0xff]
  %v216 = vadd.f32 %v214, 1e-05
  %v217 = vrsqrt.pop %v216
  %v218 = vmul.f32 %v215, %v217
  %v219 = vmul.f32 %v200, %v218
  %221 = vrot.lane.b32.xlu0 %v219, 1
  %v222 = vpop.permute.xlu0 %221
  %v224 = vsub.f32 %v215, %v222
  %226 = vset.pattern.permute.xlu0 0
  %227 = vperm.xlu0 %226, %v218
  %v228 = vpop.permute.xlu0 %227
  %v230 = vmul.f32 %v119, %v228
  %v231 = vmul.f32 %v121, %v228
  %v232 = vmul.f32 %v190, %v228
  %v233 = vmul.f32 %v192, %v228
  %235 = vset.pattern.permute.xlu0 1
  %236 = vperm.xlu0 %235, %v224
  %v237 = vpop.permute.xlu0 %236
  %v239 = vadd.f32 %v230, %v237
  %v240 = vadd.f32 %v231, %v237
  %v241 = vadd.f32 %v232, %v237
  %v242 = vadd.f32 %v233, %v237
  %v243 = vmax.f32 %v239, 0.0
  %v244 = vmax.f32 %v240, 0.0
  %v245 = vmax.f32 %v241, 0.0
  %v246 = vmax.f32 %v242, 0.0
  %247 = vst [vmem:[%s3] sm:$0xff] %v243
  %248 = vst [vmem:[%s3 + $0x8] sm:$0xff] %v244
  %s249 = scalar_lea.vmem %s3, 16
  %250 = vst [vmem:[%s249] sm:$0xff] %v245
  %251 = vst [vmem:[%s249 + $0x8] sm:$0xff] %v246
  // Predicated region
  $region14: #{conv_bn_relu.1} parent=0 // pred_check
    _
  $region15: #{conv_bn_relu.1} parent=0 // pred_check_branch
    %253 = sbr.rel (0) target = $region17
  $region16: #{conv_bn_relu.1} parent=0 // pred_region
    _
  $region17: #{conv_bn_relu.1} parent=0 // pred_fallthru
    _
  // Predicated region
  $region18: #{conv_bn_relu.1} parent=0 // pred_check
    _
  $region19: #{conv_bn_relu.1} parent=0 // pred_check_branch
    %255 = sbr.rel (0) target = $region21
  $region20: #{conv_bn_relu.1} parent=0 // pred_region
    _
  $region21: #{conv_bn_relu.1} parent=0 // pred_fallthru
    _

</llo_original>
